<compile_context>
chip_gen: v6e
topology: v6e:2x2x1
jax: 0.10.0
libtpu: 0.0.40
codegen_flags: <defaults>
</compile_context>

<pallas_src>
import math
import functools

import numpy as np
import jax
import jax.numpy as jnp
from jax.experimental import pallas as pl
from jax.experimental.pallas import tpu as pltpu


def _pe_kernel(coef_ref, offs_ref, o_ref, *, tile_len):
    # o_ref block: (1, tile_len * total_feat_dim), flattened (pos, channel).
    # For flat element f = p_local*tfd + c within this L-tile:
    #   angle[f] = (tile_base + p_local) * pos_scale * inv_dim[c] + phase[c]
    #            = tile_base * coef[f] + offs[f]
    # (even channels phase=0 -> sin, odd channels phase=pi/2 -> cos,
    #  padded tail channel coef=offs=0 -> sin(0)=0)
    base = (pl.program_id(0) * tile_len).astype(jnp.float32)
    o_ref[...] = jnp.sin(base * coef_ref[...] + offs_ref[...]).astype(o_ref.dtype)


def _choose_tile_len(L, total_feat_dim, max_block_elems):
    """Largest L-tile whose flattened width (tile*tfd) is a multiple of 128
    (required by the (8,128) block rule unless the block spans the full array)
    while keeping the f32 block around <=2 MiB (VMEM-friendly on v7x)."""
    if L * total_feat_dim <= max_block_elems:
        return L  # single full-extent block (always a legal block shape)
    step = 128 // math.gcd(total_feat_dim, 128)   # smallest legal tile granule
    tile = (max_block_elems // total_feat_dim) // step * step
    return max(step, min(tile, L))


def position_embedding_sine_1d(B, L, *, num_pos_feats=16, temperature=10000,
                               normalize=True, scale=None, total_feat_dim=32,
                               dtype=jnp.float32, max_block_elems=512 * 1024):
    if scale is not None and normalize is False:
        raise ValueError("normalize should be True if scale is passed")
    if scale is None:
        scale = 2 * math.pi
    if total_feat_dim not in (2 * num_pos_feats, 2 * num_pos_feats + 1):
        raise ValueError("total_feat_dim must be 2*num_pos_feats or 2*num_pos_feats+1")

    tfd = total_feat_dim
    tile_len = _choose_tile_len(L, tfd, max_block_elems)
    num_tiles = pl.cdiv(L, tile_len)

    # ---- per-channel constants, hoisted to trace time (float64 for accuracy)
    k = np.arange(num_pos_feats, dtype=np.float64)
    inv_dim_t = np.power(float(temperature), -2.0 * k / float(num_pos_feats))
    inv_dim = np.zeros((tfd,), np.float64)
    phase = np.zeros((tfd,), np.float64)
    inv_dim[0:2 * num_pos_feats:2] = inv_dim_t        # even channels -> sin
    inv_dim[1:2 * num_pos_feats:2] = inv_dim_t        # odd channels  -> cos
    phase[1:2 * num_pos_feats:2] = 0.5 * np.pi        # cos(x) = sin(x + pi/2)
    # odd total_feat_dim: last channel keeps inv_dim=0, phase=0 -> output 0

    pos_scale = scale / (L - 1 + 1e-6) if normalize else 1.0

    # Flattened per-element coefficients for one L-tile (f = p_local*tfd + c):
    #   coef[f] = pos_scale * inv_dim[c]                 (multiplies tile_base)
    #   offs[f] = p_local * pos_scale * inv_dim[c] + phase[c]
    p_local = np.arange(tile_len, dtype=np.float64)[:, None]
    scaled_inv = pos_scale * inv_dim[None, :]
    coef2d = np.broadcast_to(scaled_inv, (tile_len, tfd))
    offs2d = p_local * scaled_inv + phase[None, :]
    coef = jnp.asarray(coef2d.reshape(1, tile_len * tfd), jnp.float32)
    offs = jnp.asarray(offs2d.reshape(1, tile_len * tfd), jnp.float32)

    kernel = functools.partial(_pe_kernel, tile_len=tile_len)
    flat = pl.pallas_call(
        kernel,
        out_shape=jax.ShapeDtypeStruct((1, L * tfd), dtype),
        grid=(num_tiles,),
        in_specs=[
            pl.BlockSpec((1, tile_len * tfd), lambda i: (0, 0)),  # resident
            pl.BlockSpec((1, tile_len * tfd), lambda i: (0, 0)),  # resident
        ],
        out_specs=pl.BlockSpec((1, tile_len * tfd), lambda i: (0, i)),
        compiler_params=pltpu.CompilerParams(
            dimension_semantics=("parallel",)),
    )(coef, offs)

    plane = flat.reshape(L, tfd)                       # free row-major reshape
    return jnp.broadcast_to(plane[None], (B, L, tfd))  # batch-invariant expand


def _reference_pe(B, L, num_pos_feats, temperature, normalize, scale,
                  total_feat_dim):
    """Pure-JAX transliteration of the PyTorch forward for verification."""
    if scale is None:
        scale = 2 * math.pi
    pos = jnp.tile(jnp.arange(L, dtype=jnp.float32)[None, :], (B, 1))
    if normalize:
        pos = pos / (pos[:, -1:] + 1e-6) * scale
    dim_t = jnp.arange(num_pos_feats, dtype=jnp.float32)
    dim_t = temperature ** (2.0 * dim_t / num_pos_feats)
    s = jnp.sin(pos[:, :, None] / dim_t)
    c = jnp.cos(pos[:, :, None] / dim_t)
    pe = jnp.zeros((B, L, total_feat_dim), jnp.float32)
    if num_pos_feats * 2 != total_feat_dim:
        pe = pe.at[:, :, 0:total_feat_dim - 1:2].set(s)
        pe = pe.at[:, :, 1::2].set(c)
    else:
        pe = pe.at[:, :, 0::2].set(s)
        pe = pe.at[:, :, 1::2].set(c)
    return pe


if __name__ == "__main__":
    # Module has no learned params / randomness; key kept for determinism parity.
    _ = jax.random.PRNGKey(0)

    B, L = 2, 8

    # Case 1: even total_feat_dim == 2*num_pos_feats (standard interleave).
    npf, tfd = 16, 32
    out_even = position_embedding_sine_1d(B, L, num_pos_feats=npf,
                                          total_feat_dim=tfd)
    jax.block_until_ready(out_even)
    ref_even = _reference_pe(B, L, npf, 10000, True, None, tfd)
    assert out_even.shape == (B, L, tfd) and out_even.dtype == jnp.float32
    assert jnp.allclose(out_even, ref_even, atol=2e-5, rtol=1e-5)

    # Case 2: odd total_feat_dim == 2*num_pos_feats + 1 (last channel zero).
    npf2, tfd2 = 16, 33
    out_odd = position_embedding_sine_1d(B, L, num_pos_feats=npf2,
                                         total_feat_dim=tfd2)
    jax.block_until_ready(out_odd)
    ref_odd = _reference_pe(B, L, npf2, 10000, True, None, tfd2)
    assert out_odd.shape == (B, L, tfd2)
    assert jnp.allclose(out_odd, ref_odd, atol=2e-5, rtol=1e-5)

    # Case 3: exercise the L-tiled multi-step grid (incl. partial last block)
    # at a small shape by shrinking the per-block element budget.
    B3, L3 = 2, 10
    out_tiled = position_embedding_sine_1d(B3, L3, num_pos_feats=npf,
                                           total_feat_dim=tfd,
                                           max_block_elems=128)
    jax.block_until_ready(out_tiled)
    ref_tiled = _reference_pe(B3, L3, npf, 10000, True, None, tfd)
    assert out_tiled.shape == (B3, L3, tfd)
    assert jnp.allclose(out_tiled, ref_tiled, atol=2e-5, rtol=1e-5)

    print("KERNEL_OK")
</pallas_src>

<mosaic_0001>
module attributes {stable_mosaic.version = 11 : i64} {
  func.func @_pe_kernel(%arg0: i32, %arg1: memref<1x256xf32, #tpu.memory_space<vmem>>, %arg2: memref<1x256xf32, #tpu.memory_space<vmem>>, %arg3: memref<1x256xf32, #tpu.memory_space<vmem>>) attributes {dimension_semantics = [#tpu.dimension_semantics<parallel>], iteration_bounds = array<i64: 1>, scalar_prefetch = 0 : i64, scratch_operands = 0 : i64, tpu.core_type = #tpu.core_type<tc>, window_params = [{pipeline_mode = #tpu.pipeline_mode<synchronous>, transform_indices = @transform_0, window_bounds = array<i64: 1, 256>}, {pipeline_mode = #tpu.pipeline_mode<synchronous>, transform_indices = @transform_1, window_bounds = array<i64: 1, 256>}, {transform_indices = @transform_2, window_bounds = array<i64: 1, 256>}]} {
    %c8_i32 = arith.constant 8 : i32
    %0 = arith.muli %arg0, %c8_i32 : i32
    %1 = arith.sitofp %0 : i32 to f32
    %c0 = arith.constant 0 : index
    %c0_0 = arith.constant 0 : index
    %2 = vector.load %arg1[%c0, %c0_0] : memref<1x256xf32, #tpu.memory_space<vmem>>, vector<1x256xf32>
    %3 = vector.broadcast %1 : f32 to vector<1x256xf32>
    %4 = arith.mulf %3, %2 : vector<1x256xf32>
    %c0_1 = arith.constant 0 : index
    %c0_2 = arith.constant 0 : index
    %5 = vector.load %arg2[%c0_1, %c0_2] : memref<1x256xf32, #tpu.memory_space<vmem>>, vector<1x256xf32>
    %6 = arith.addf %4, %5 : vector<1x256xf32>
    %7 = math.sin %6 : vector<1x256xf32>
    %c0_3 = arith.constant 0 : index
    %c0_4 = arith.constant 0 : index
    %8 = vector.load %arg3[%c0_3, %c0_4] : memref<1x256xf32, #tpu.memory_space<vmem>>, vector<1x256xf32>
    tpu.vector_store %arg3[%c0_3, %c0_4], %7 {strides = array<i32>} : memref<1x256xf32, #tpu.memory_space<vmem>>, vector<1x256xf32>,
    return
  }
  func.func @transform_0(%arg0: i32) -> (i32, i32) {
    %c0_i32 = arith.constant 0 : i32
    %c0_i32_0 = arith.constant 0 : i32
    %c0_i32_1 = arith.constant 0 : i32
    return %c0_i32, %c0_i32_0 : i32, i32
  }
  func.func @transform_1(%arg0: i32) -> (i32, i32) {
    %c0_i32 = arith.constant 0 : i32
    %c0_i32_0 = arith.constant 0 : i32
    %c0_i32_1 = arith.constant 0 : i32
    return %c0_i32, %c0_i32_0 : i32, i32
  }
  func.func @transform_2(%arg0: i32) -> (i32, i32) {
    %c0_i32 = arith.constant 0 : i32
    %c0_i32_0 = arith.constant 0 : i32
    return %c0_i32, %arg0 : i32, i32
  }
}

</mosaic_0001>

<llo_original>
// kernel: tpu_custom_call.1
$region0: #{tpu_custom_call.1}
  #allocation0 [shape = 'u32[]', space=smem, size = 0x4, offset = 0x4, fixed_abs, tag = 'smem constant byte address 0x4 - core index']
  #allocation1 [shape = 'u32[144,128]{1,0:T(1,128)}', space=vmem, size = 0x12000, scoped, tag = 'internal scratch']
  %s0 = inlined_call_operand.hbm [shape: f32[1,256], index: 0, kind: input, shape index: {}]
  %s1 = inlined_call_operand.hbm [shape: f32[1,256], index: 1, kind: input, shape index: {}]
  %s2 = inlined_call_operand.hbm [shape: f32[1,256], index: 2, kind: output, shape index: {}]
  %s3 = sld [smem:[#allocation0]]
  $region26: #{tpu_custom_call.1} parent=0
    _
  %s5 = ssub.s32 1, %s3
  %s6 = scalar_select 0, %s5, %s3
  $region1: #{tpu_custom_call.1} parent=0
    #allocation2 [shape = 'u8[1024]{0}', space=vmem, size = 0x400, scoped, tag = 'input window, operand 0, single buffered']
    #allocation3 [shape = 's32[1]{0}', space=sflag, size = 0x4, scoped, tag = 'scoped memory for tpu_custom_call.1']
    #allocation4 [shape = 's32[1]{0}', space=sflag, size = 0x4, scoped, tag = 'scoped memory for tpu_custom_call.1']
    #allocation5 [shape = 'u8[1024]{0}', space=vmem, size = 0x400, scoped, tag = 'input window, operand 1, single buffered']
    #allocation6 [shape = 's32[1]{0}', space=sflag, size = 0x4, scoped, tag = 'scoped memory for tpu_custom_call.1']
    #allocation7 [shape = 'u8[1024]{0}', space=vmem, size = 0x400, scoped, tag = 'output window, operand 0, single buffered']
    %7 = vsyncpa [#allocation3], 0
    %8 = vsyncpa [#allocation6], 0
    %9 = vsyncpa [#allocation4], 0
    // Predicated region
    $region2: #{tpu_custom_call.1} parent=1 // pred_check
      _
    $region3: #{tpu_custom_call.1} parent=1 // pred_check_branch
      %11 = sbr.rel (0) target = $region5
    $region4: #{tpu_custom_call.1} parent=1 // pred_region
      %s13 = ssub.s32 32, 32
      %14 = vsyncadd [#allocation3], %s13
      %s16 = sshll.u32 [#allocation2], 4
      %s17 = int_to_ptr.vmem [resolvable:$true] %s16
      %19 = dma.hbm_to_vmem [thread:$0]  %s0, 32, %s17, [#allocation3]
    $region5: #{tpu_custom_call.1} parent=1 // pred_fallthru
      _
    // Predicated region
    $region6: #{tpu_custom_call.1} parent=1 // pred_check
      _
    $region7: #{tpu_custom_call.1} parent=1 // pred_check_branch
      %21 = sbr.rel (0) target = $region9
    $region8: #{tpu_custom_call.1} parent=1 // pred_region
      %s23 = ssub.s32 32, 32
      %24 = vsyncadd [#allocation6], %s23
      %s26 = sshll.u32 [#allocation5], 4
      %s27 = int_to_ptr.vmem [resolvable:$true] %s26
      %29 = dma.hbm_to_vmem [thread:$0]  %s1, 32, %s27, [#allocation6]
    $region9: #{tpu_custom_call.1} parent=1 // pred_fallthru
      _
    // Predicated region
    $region10: #{tpu_custom_call.1} parent=1 // pred_check
      _
    $region11: #{tpu_custom_call.1} parent=1 // pred_check_branch
      %31 = sbr.rel (0) target = $region13
    $region12: #{tpu_custom_call.1} parent=1 // pred_region
      %32 = dma.done [#allocation3], 32
    $region13: #{tpu_custom_call.1} parent=1 // pred_fallthru
      _
    // Predicated region
    $region14: #{tpu_custom_call.1} parent=1 // pred_check
      _
    $region15: #{tpu_custom_call.1} parent=1 // pred_check_branch
      %34 = sbr.rel (0) target = $region17
    $region16: #{tpu_custom_call.1} parent=1 // pred_region
      %35 = dma.done [#allocation6], 32
    $region17: #{tpu_custom_call.1} parent=1 // pred_fallthru
      _
    %s36 = smul.u32 0, 8
    %s37 = scvt.s32.f32 %s36
    %v38 = vld [vmem:[#allocation2] sm:$0x3]
    %v39 = vstv %s37
    %v40 = vmul.f32 %v39, %v38
    %v41 = vld [vmem:[#allocation5] sm:$0x3]
    %v42 = vadd.f32 %v40, %v41
    %v43 = vand.u32 2147483647, %v42
    %vm44 = vcmp.le.f32.partialorder %v43, 0.7853982
    %vm45 = vcmp.lt.s32.totalorder %v42, 0
    %v46 = vand.u32 %v42, 2139095040
    %v47 = vshrl.u32 %v46, 23
    %v48 = vsub.s32 %v47, 127
    %v49 = vand.u32 2147483647, %v42
    %v50 = vand.u32 %v49, 8388607
    %v51 = vor.u32 %v50, 8388608
    %v52 = vsub.s32 0, %v51
    %v53 = vadd.s32 %v48, 1
    %vm54 = vcmp.gt.s32.totalorder %v53, 0
    %v55 = vsel %vm54, %v53, 0
    %v56 = vshrl.u32 %v55, 5
    %v57 = vand.u32 %v55, 31
    %v58 = vsub.s32 32, %v57
    %v59 = vshrl.u32 683565275, %v58
    %v60 = vshll.u32 683565275, %v57
    %v61 = vshrl.u32 2475754826, %v58
    %v62 = vor.u32 %v60, %v61
    %v63 = vshll.u32 2475754826, %v57
    %v64 = vshrl.u32 2131351028, %v58
    %v65 = vor.u32 %v63, %v64
    %v66 = vshll.u32 2131351028, %v57
    %v67 = vshrl.u32 2102212464, %v58
    %v68 = vor.u32 %v66, %v67
    %v69 = vshll.u32 2102212464, %v57
    %v70 = vshrl.u32 920167782, %v58
    %v71 = vor.u32 %v69, %v70
    %v72 = vshll.u32 920167782, %v57
    %v73 = vshrl.u32 1326507024, %v58
    %v74 = vor.u32 %v72, %v73
    %vm75 = vcmp.lt.s32.totalorder %v56, 1
    %vm76 = vcmp.lt.s32.totalorder %v56, 2
    %vm77 = vcmp.lt.s32.totalorder %v56, 3
    %vm78 = vcmp.lt.s32.totalorder %v56, 4
    %v79 = vsel %vm75, %v59, %v62
    %v80 = vsel %vm78, %v68, 2102212464
    %v81 = vsel %vm77, %v65, %v80
    %v82 = vsel %vm76, %v79, %v81
    %v83 = vsel %vm75, %v62, %v65
    %v84 = vsel %vm78, %v71, 920167782
    %v85 = vsel %vm77, %v68, %v84
    %v86 = vsel %vm76, %v83, %v85
    %v87 = vsel %vm75, %v65, %v68
    %v88 = vsel %vm78, %v74, 1326507024
    %v89 = vsel %vm77, %v71, %v88
    %v90 = vsel %vm76, %v87, %v89
    %v91 = vshll.u32 %v51, 8
    %v92 = vmul.u32.u64.compose %v91, %v90
    %v93 = vextract.low.u32 %v92
    %v94 = vextract.high.u32 %v92
    %v95 = vmul.u32.u64.compose %v91, %v86
    %v96 = vextract.low.u32 %v95
    %v97 = vextract.high.u32 %v95
    %v98 = vmul.u32 %v91, %v82
    %v99 = vadd.s32 %v94, %v96
    %vm100 = vc.u32 %v94, %v96
    %v101 = vadd.s32 %v97, 1
    %v102 = vsel %vm100, %v101, %v97
    %v103 = vadd.s32 %v98, %v102
    %v104 = vadd.s32 %v103, 536870912
    %v105 = vshrl.u32 %v104, 30
    %v106 = vshll.u32 %v105, 30
    %v107 = vsub.s32 %v103, %v106
    %vm108 = vcmp.lt.s32.totalorder %v107, 0
    %v109 = vsub.s32 0, %v107
    %v110 = vsel %vm108, %v109, %v107
    %v111 = vclz %v110
    %v112 = vsub.s32 %v111, 2
    %vm113 = vcmp.gt.s32.totalorder 0, %v112
    %v114 = vsel %vm113, 0, %v112
    %v115 = vsub.s32 32, %v114
    %v116 = vshll.u32 %v107, %v114
    %v117 = vshrl.u32 %v99, %v115
    %v118 = vor.u32 %v116, %v117
    %v119 = vsub.s32 4294967266, %v114
    %v120 = vadd.s32 %v119, 127
    %v121 = vshll.u32 %v120, 23
    %v122 = vor.u32 4788187, %v121
    %v123 = vand.u32 2147483647, %v122
    %v125 = vcvt.s32.f32 %v118
    %v126 = vmul.f32 %v125, %v123
    %v127 = vxor.u32 %v126, 2147483648
    %v128 = vsel %vm45, %v127, %v126
    %v129 = vsub.s32 4, %v105
    %v130 = vsel %vm45, %v129, %v105
    %v131 = vsel %vm44, %v42, %v128
    %v132 = vsel %vm44, 0, %v130
    %v133 = vcosq.f32.pop %v131
    %v134 = vsinq.f32.pop %v131
    %vm135 = vweird.f32 %v42
    %v136 = vadd.s32 %v132, 3
    %v137 = vand.u32 %v136, 3
    %vm138 = vcmp.lt.s32.totalorder %v137, 2
    %vm139 = vcmp.eq.s32.totalorder %v137, 0
    %v140 = vxor.u32 %v134, 2147483648
    %v141 = vsel %vm139, %v133, %v140
    %vm142 = vcmp.eq.s32.totalorder %v137, 2
    %v143 = vxor.u32 %v133, 2147483648
    %v144 = vsel %vm142, %v143, %v134
    %v145 = vsel %vm138, %v141, %v144
    %v146 = vsel %vm135, nan, %v145
    %v147 = vlaneseq
    %vm148 = vcmp.ge.s32.totalorder %v147, 0
    %vm149 = vcmp.lt.s32.totalorder %v147, 256
    %vm150 = vmand %vm148, %vm149
    %151 = vst.msk [vmem:[#allocation7] sm:$0x3] %vm150, %v146
    // Predicated region
    $region18: #{tpu_custom_call.1} parent=1 // pred_check
      _
    $region19: #{tpu_custom_call.1} parent=1 // pred_check_branch
      %153 = sbr.rel (0) target = $region21
    $region20: #{tpu_custom_call.1} parent=1 // pred_region
      %s155 = ssub.s32 32, 32
      %156 = vsyncadd [#allocation4], %s155
      %s158 = sshll.u32 [#allocation7], 4
      %s159 = int_to_ptr.vmem [resolvable:$true] %s158
      %161 = dma.vmem_to_hbm [thread:$0]  %s159, 32, %s2, [#allocation4]
    $region21: #{tpu_custom_call.1} parent=1 // pred_fallthru
      _
    // Predicated region
    $region22: #{tpu_custom_call.1} parent=1 // pred_check
      _
    $region23: #{tpu_custom_call.1} parent=1 // pred_check_branch
      %163 = sbr.rel (0) target = $region25
    $region24: #{tpu_custom_call.1} parent=1 // pred_region
      %164 = dma.done [#allocation4], 32
    $region25: #{tpu_custom_call.1} parent=1 // pred_fallthru
      _
    %165 = vsyncpa [#allocation3], 1
    %166 = vsyncpa [#allocation6], 1
    %167 = vsyncpa [#allocation4], 1

</llo_original>
